<compile_context>
chip_gen: v7x
topology: tpu7x:2x2x1
jax: 0.10.0
libtpu: 0.0.40
codegen_flags: <defaults>
</compile_context>

<pallas_src>
import jax
import jax.numpy as jnp
from jax.experimental import pallas as pl
from jax.experimental.pallas import tpu as pltpu


def _mlp_kernel(x_ref, w1_ref, b1_ref, w2_ref, b2_ref, w3t_ref, b3t_ref, o_ref):
    # x_ref: (TB, 16) bf16; w* bf16; b* f32; o_ref: (2, TB) f32 (lane-dense).
    x = x_ref[...]
    h1 = jnp.dot(x, w1_ref[...], preferred_element_type=jnp.float32) + b1_ref[...]
    h1 = h1.astype(jnp.bfloat16)
    h2 = jnp.dot(h1, w2_ref[...], preferred_element_type=jnp.float32) + b2_ref[...]
    h2 = h2.astype(jnp.bfloat16)
    # Last layer computed directly transposed: (2, 32) contracted with (TB, 32) -> (2, TB)
    h3t = jax.lax.dot_general(
        w3t_ref[...], h2,
        dimension_numbers=(((1,), (1,)), ((), ())),
        preferred_element_type=jnp.float32,
    ) + b3t_ref[...]
    # sigmoid(z) = 1 / (1 + exp(-z)); exp -> EUP, approx reciprocal -> EUP.
    o_ref[...] = pl.reciprocal(1.0 + jnp.exp(-h3t), approx=True).astype(o_ref.dtype)


def logistic_regression_forward(x, w1, b1, w2, b2, w3, b3, *, batch_tile=1024):
    """x: (B, 15) f32; w_i stored as (in, out); b_i as (out,). Returns (B, 2) f32."""
    B, K = x.shape
    H1 = w1.shape[1]
    H2 = w2.shape[1]
    OUT = w3.shape[1]

    # Pad contraction dim 15 -> 16 (aligned K; zero rows are numerically inert).
    Kp = 16
    x_p = jnp.pad(x, ((0, 0), (0, Kp - K)))
    w1_p = jnp.pad(w1, ((0, Kp - K), (0, 0)))

    # Batch tile: one full-array tile for small B, streamed tiles otherwise.
    if B <= batch_tile:
        tb = max(8, ((B + 7) // 8) * 8)
    else:
        tb = batch_tile
    b_pad = ((B + tb - 1) // tb) * tb
    if b_pad != B:
        x_p = jnp.pad(x_p, ((0, b_pad - B), (0, 0)))
    grid = (b_pad // tb,)

    # bf16 streams/weights, f32 biases.
    x_bf = x_p.astype(jnp.bfloat16)
    w1_bf = w1_p.astype(jnp.bfloat16)
    w2_bf = w2.astype(jnp.bfloat16)
    w3t_bf = w3.T.astype(jnp.bfloat16)                 # (2, 32)
    b1_f = b1.reshape(1, H1).astype(jnp.float32)
    b2_f = b2.reshape(1, H2).astype(jnp.float32)
    b3t_f = b3.reshape(OUT, 1).astype(jnp.float32)     # (2, 1)

    flops = 2 * b_pad * (Kp * H1 + H1 * H2 + H2 * OUT)
    bytes_accessed = (
        x_bf.size * 2 + w1_bf.size * 2 + w2_bf.size * 2 + w3t_bf.size * 2
        + (b1_f.size + b2_f.size + b3t_f.size) * 4
        + OUT * b_pad * 4
    )
    cost = pl.CostEstimate(
        flops=flops, transcendentals=b_pad * OUT, bytes_accessed=bytes_accessed)

    out_t = pl.pallas_call(
        _mlp_kernel,
        out_shape=jax.ShapeDtypeStruct((OUT, b_pad), jnp.float32),
        grid=grid,
        in_specs=[
            pl.BlockSpec((tb, Kp), lambda i: (i, 0)),   # x: streamed over the batch
            pl.BlockSpec((Kp, H1), lambda i: (0, 0)),   # weights/biases: VMEM-resident
            pl.BlockSpec((1, H1), lambda i: (0, 0)),
            pl.BlockSpec((H1, H2), lambda i: (0, 0)),
            pl.BlockSpec((1, H2), lambda i: (0, 0)),
            pl.BlockSpec((OUT, H2), lambda i: (0, 0)),
            pl.BlockSpec((OUT, 1), lambda i: (0, 0)),
        ],
        out_specs=pl.BlockSpec((OUT, tb), lambda i: (0, i)),  # lane-dense (2, TB) blocks
        compiler_params=pltpu.CompilerParams(
            dimension_semantics=("parallel",),
        ),
        cost_estimate=cost,
    )(x_bf, w1_bf, b1_f, w2_bf, b2_f, w3t_bf, b3t_f)

    return out_t.T[:B]  # (B, 2) f32


def init_params(key):
    """PyTorch nn.Linear default init (U[-1/sqrt(fan_in), +1/sqrt(fan_in)]).
    Weights stored transposed as (in_features, out_features), biases as (out,)."""
    dims = [(15, 128), (128, 32), (32, 2)]
    params = []
    for fan_in, fan_out in dims:
        key, kw, kb = jax.random.split(key, 3)
        bound = 1.0 / (fan_in ** 0.5)
        w = jax.random.uniform(kw, (fan_in, fan_out), jnp.float32, -bound, bound)
        b = jax.random.uniform(kb, (fan_out,), jnp.float32, -bound, bound)
        params.extend([w, b])
    return params


def reference_forward(x, w1, b1, w2, b2, w3, b3):
    """Pure-JAX reference emulating the kernel precision (bf16 operands, f32 accum)."""
    h1 = jnp.dot(x.astype(jnp.bfloat16), w1.astype(jnp.bfloat16),
                 preferred_element_type=jnp.float32) + b1
    h1 = h1.astype(jnp.bfloat16)
    h2 = jnp.dot(h1, w2.astype(jnp.bfloat16),
                 preferred_element_type=jnp.float32) + b2
    h2 = h2.astype(jnp.bfloat16)
    h3 = jnp.dot(h2, w3.astype(jnp.bfloat16),
                 preferred_element_type=jnp.float32) + b3
    return jax.nn.sigmoid(h3)


if __name__ == "__main__":
    key = jax.random.PRNGKey(0)
    key, kx = jax.random.split(key)
    w1, b1, w2, b2, w3, b3 = init_params(key)

    # Small demo batch (single grid step).
    B = 8
    x = jax.random.normal(kx, (B, 15), jnp.float32)
    out = jax.block_until_ready(
        logistic_regression_forward(x, w1, b1, w2, b2, w3, b3))
    ref = reference_forward(x, w1, b1, w2, b2, w3, b3)
    assert out.shape == (B, 2), out.shape
    assert jnp.allclose(out, ref, atol=5e-3, rtol=5e-3), "mismatch (small batch)"

    # Streamed path: non-multiple batch, 512-row tiles, 2 grid steps.
    key, kx2 = jax.random.split(key)
    B2 = 1000
    x2 = jax.random.normal(kx2, (B2, 15), jnp.float32)
    out2 = jax.block_until_ready(
        logistic_regression_forward(x2, w1, b1, w2, b2, w3, b3, batch_tile=512))
    ref2 = reference_forward(x2, w1, b1, w2, b2, w3, b3)
    assert out2.shape == (B2, 2), out2.shape
    assert jnp.allclose(out2, ref2, atol=5e-3, rtol=5e-3), "mismatch (streamed batch)"

    print("KERNEL_OK")
</pallas_src>

<mosaic_0001>
module attributes {stable_mosaic.version = 11 : i64} {
  func.func @_mlp_kernel(%arg0: i32, %arg1: memref<8x16xbf16, #tpu.memory_space<vmem>>, %arg2: memref<16x128xbf16, #tpu.memory_space<vmem>>, %arg3: memref<1x128xf32, #tpu.memory_space<vmem>>, %arg4: memref<128x32xbf16, #tpu.memory_space<vmem>>, %arg5: memref<1x32xf32, #tpu.memory_space<vmem>>, %arg6: memref<2x32xbf16, #tpu.memory_space<vmem>>, %arg7: memref<2x1xf32, #tpu.memory_space<vmem>>, %arg8: memref<2x8xf32, #tpu.memory_space<vmem>>) attributes {dimension_semantics = [#tpu.dimension_semantics<parallel>], iteration_bounds = array<i64: 1>, scalar_prefetch = 0 : i64, scratch_operands = 0 : i64, tpu.core_type = #tpu.core_type<tc>, window_params = [{transform_indices = @transform_0, window_bounds = array<i64: 8, 16>}, {pipeline_mode = #tpu.pipeline_mode<synchronous>, transform_indices = @transform_1, window_bounds = array<i64: 16, 128>}, {pipeline_mode = #tpu.pipeline_mode<synchronous>, transform_indices = @transform_2, window_bounds = array<i64: 1, 128>}, {pipeline_mode = #tpu.pipeline_mode<synchronous>, transform_indices = @transform_3, window_bounds = array<i64: 128, 32>}, {pipeline_mode = #tpu.pipeline_mode<synchronous>, transform_indices = @transform_4, window_bounds = array<i64: 1, 32>}, {pipeline_mode = #tpu.pipeline_mode<synchronous>, transform_indices = @transform_5, window_bounds = array<i64: 2, 32>}, {pipeline_mode = #tpu.pipeline_mode<synchronous>, transform_indices = @transform_6, window_bounds = array<i64: 2, 1>}, {transform_indices = @transform_7, window_bounds = array<i64: 2, 8>}]} {
    %c0 = arith.constant 0 : index
    %c0_0 = arith.constant 0 : index
    %0 = vector.load %arg1[%c0, %c0_0] : memref<8x16xbf16, #tpu.memory_space<vmem>>, vector<8x16xbf16>
    %c0_1 = arith.constant 0 : index
    %c0_2 = arith.constant 0 : index
    %1 = vector.load %arg2[%c0_1, %c0_2] : memref<16x128xbf16, #tpu.memory_space<vmem>>, vector<16x128xbf16>
    %cst = arith.constant dense<0.000000e+00> : vector<8x128xf32>
    %2 = tpu.matmul %0, %1, %cst {dimension_numbers = #tpu.dot_dimension_numbers<[1], [0], [0], [1], [0, 0, 1, 1], [], []>} : vector<8x16xbf16>, vector<16x128xbf16>, vector<8x128xf32> -> vector<8x128xf32>
    %c0_3 = arith.constant 0 : index
    %c0_4 = arith.constant 0 : index
    %3 = vector.load %arg3[%c0_3, %c0_4] : memref<1x128xf32, #tpu.memory_space<vmem>>, vector<1x128xf32>
    %4 = vector.broadcast %3 : vector<1x128xf32> to vector<8x128xf32>
    %5 = arith.addf %2, %4 : vector<8x128xf32>
    %6 = arith.truncf %5 : vector<8x128xf32> to vector<8x128xbf16>
    %c0_5 = arith.constant 0 : index
    %c0_6 = arith.constant 0 : index
    %7 = vector.load %arg4[%c0_5, %c0_6] : memref<128x32xbf16, #tpu.memory_space<vmem>>, vector<128x32xbf16>
    %cst_7 = arith.constant dense<0.000000e+00> : vector<8x32xf32>
    %8 = tpu.matmul %6, %7, %cst_7 {dimension_numbers = #tpu.dot_dimension_numbers<[1], [0], [0], [1], [0, 0, 1, 1], [], []>} : vector<8x128xbf16>, vector<128x32xbf16>, vector<8x32xf32> -> vector<8x32xf32>
    %c0_8 = arith.constant 0 : index
    %c0_9 = arith.constant 0 : index
    %9 = vector.load %arg5[%c0_8, %c0_9] : memref<1x32xf32, #tpu.memory_space<vmem>>, vector<1x32xf32>
    %10 = vector.broadcast %9 : vector<1x32xf32> to vector<8x32xf32>
    %11 = arith.addf %8, %10 : vector<8x32xf32>
    %12 = arith.truncf %11 : vector<8x32xf32> to vector<8x32xbf16>
    %c0_10 = arith.constant 0 : index
    %c0_11 = arith.constant 0 : index
    %13 = vector.load %arg6[%c0_10, %c0_11] : memref<2x32xbf16, #tpu.memory_space<vmem>>, vector<2x32xbf16>
    %cst_12 = arith.constant dense<0.000000e+00> : vector<2x8xf32>
    %14 = tpu.matmul %13, %12, %cst_12 {dimension_numbers = #tpu.dot_dimension_numbers<[1], [1], [0], [0], [0, 0, 1, 0], [], []>} : vector<2x32xbf16>, vector<8x32xbf16>, vector<2x8xf32> -> vector<2x8xf32>
    %c0_13 = arith.constant 0 : index
    %c0_14 = arith.constant 0 : index
    %15 = vector.load %arg7[%c0_13, %c0_14] : memref<2x1xf32, #tpu.memory_space<vmem>>, vector<2x1xf32>
    %16 = vector.broadcast %15 : vector<2x1xf32> to vector<2x8xf32>
    %17 = arith.addf %14, %16 : vector<2x8xf32>
    %cst_15 = arith.constant 0.000000e+00 : f32
    %18 = vector.broadcast %cst_15 : f32 to vector<2x8xf32>
    %19 = arith.subf %18, %17 : vector<2x8xf32>
    %20 = math.exp %19 : vector<2x8xf32>
    %cst_16 = arith.constant 1.000000e+00 : f32
    %21 = vector.broadcast %cst_16 : f32 to vector<2x8xf32>
    %22 = arith.addf %21, %20 : vector<2x8xf32>
    %23 = tpu.reciprocal %22 {approx = true} : vector<2x8xf32> -> vector<2x8xf32>
    %c0_17 = arith.constant 0 : index
    %c0_18 = arith.constant 0 : index
    %24 = vector.load %arg8[%c0_17, %c0_18] : memref<2x8xf32, #tpu.memory_space<vmem>>, vector<2x8xf32>
    tpu.vector_store %arg8[%c0_17, %c0_18], %23 {strides = array<i32>} : memref<2x8xf32, #tpu.memory_space<vmem>>, vector<2x8xf32>,
    return
  }
  func.func @transform_0(%arg0: i32) -> (i32, i32) {
    %c0_i32 = arith.constant 0 : i32
    %c0_i32_0 = arith.constant 0 : i32
    return %arg0, %c0_i32 : i32, i32
  }
  func.func @transform_1(%arg0: i32) -> (i32, i32) {
    %c0_i32 = arith.constant 0 : i32
    %c0_i32_0 = arith.constant 0 : i32
    %c0_i32_1 = arith.constant 0 : i32
    return %c0_i32, %c0_i32_0 : i32, i32
  }
  func.func @transform_2(%arg0: i32) -> (i32, i32) {
    %c0_i32 = arith.constant 0 : i32
    %c0_i32_0 = arith.constant 0 : i32
    %c0_i32_1 = arith.constant 0 : i32
    return %c0_i32, %c0_i32_0 : i32, i32
  }
  func.func @transform_3(%arg0: i32) -> (i32, i32) {
    %c0_i32 = arith.constant 0 : i32
    %c0_i32_0 = arith.constant 0 : i32
    %c0_i32_1 = arith.constant 0 : i32
    return %c0_i32, %c0_i32_0 : i32, i32
  }
  func.func @transform_4(%arg0: i32) -> (i32, i32) {
    %c0_i32 = arith.constant 0 : i32
    %c0_i32_0 = arith.constant 0 : i32
    %c0_i32_1 = arith.constant 0 : i32
    return %c0_i32, %c0_i32_0 : i32, i32
  }
  func.func @transform_5(%arg0: i32) -> (i32, i32) {
    %c0_i32 = arith.constant 0 : i32
    %c0_i32_0 = arith.constant 0 : i32
    %c0_i32_1 = arith.constant 0 : i32
    return %c0_i32, %c0_i32_0 : i32, i32
  }
  func.func @transform_6(%arg0: i32) -> (i32, i32) {
    %c0_i32 = arith.constant 0 : i32
    %c0_i32_0 = arith.constant 0 : i32
    %c0_i32_1 = arith.constant 0 : i32
    return %c0_i32, %c0_i32_0 : i32, i32
  }
  func.func @transform_7(%arg0: i32) -> (i32, i32) {
    %c0_i32 = arith.constant 0 : i32
    %c0_i32_0 = arith.constant 0 : i32
    return %c0_i32, %arg0 : i32, i32
  }
}

</mosaic_0001>

<llo_original>
// kernel: tpu_custom_call.1
$region0: #{tpu_custom_call.1}
  #allocation0 [shape = 'u32[]', space=smem, size = 0x4, offset = 0x4, fixed_abs, tag = 'smem constant byte address 0x4 - core index']
  #allocation1 [shape = 'u32[144,128]{1,0:T(1,128)}', space=vmem, size = 0x12000, scoped, tag = 'internal scratch']
  %s0 = inlined_call_operand.vmem [shape: bf16[8,16], index: 0, kind: input, shape index: {}]
  %s1 = inlined_call_operand.vmem [shape: bf16[16,128], index: 1, kind: input, shape index: {}]
  %s2 = inlined_call_operand.vmem [shape: f32[1,128], index: 2, kind: input, shape index: {}]
  %s3 = inlined_call_operand.vmem [shape: bf16[128,32], index: 3, kind: input, shape index: {}]
  %s4 = inlined_call_operand.vmem [shape: f32[1,32], index: 4, kind: input, shape index: {}]
  %s5 = inlined_call_operand.vmem [shape: bf16[2,32], index: 5, kind: input, shape index: {}]
  %s6 = inlined_call_operand.vmem [shape: f32[2,1], index: 6, kind: input, shape index: {}]
  %s7 = inlined_call_operand.hbm [shape: f32[2,8], index: 7, kind: output, shape index: {}]
  %s8 = sld [smem:[#allocation0]]
  $region38: #{tpu_custom_call.1} parent=0
    _
  %s10 = ssub.s32 1, %s8
  %s11 = scalar_select 0, %s10, %s8
  $region1: #{tpu_custom_call.1} parent=0
    #allocation2 [shape = 'u8[1024]{0}', space=vmem, size = 0x400, scoped, tag = 'output window, operand 0, single buffered']
    #allocation3 [shape = 's32[1]{0}', space=sflag, size = 0x4, scoped, tag = 'scoped memory for tpu_custom_call.1']
    %12 = vsyncpa [#allocation3], 0
    // Predicated region
    $region2: #{tpu_custom_call.1} parent=1 // pred_check
      _
    $region3: #{tpu_custom_call.1} parent=1 // pred_check_branch
      %14 = sbr.rel (0) target = $region5
    $region4: #{tpu_custom_call.1} parent=1 // pred_region
      _
    $region5: #{tpu_custom_call.1} parent=1 // pred_fallthru
      _
    // Predicated region
    $region6: #{tpu_custom_call.1} parent=1 // pred_check
      _
    $region7: #{tpu_custom_call.1} parent=1 // pred_check_branch
      %16 = sbr.rel (0) target = $region9
    $region8: #{tpu_custom_call.1} parent=1 // pred_region
      _
    $region9: #{tpu_custom_call.1} parent=1 // pred_fallthru
      _
    // Predicated region
    $region10: #{tpu_custom_call.1} parent=1 // pred_check
      _
    $region11: #{tpu_custom_call.1} parent=1 // pred_check_branch
      %18 = sbr.rel (0) target = $region13
    $region12: #{tpu_custom_call.1} parent=1 // pred_region
      _
    $region13: #{tpu_custom_call.1} parent=1 // pred_fallthru
      _
    // Predicated region
    $region14: #{tpu_custom_call.1} parent=1 // pred_check
      _
    $region15: #{tpu_custom_call.1} parent=1 // pred_check_branch
      %20 = sbr.rel (0) target = $region17
    $region16: #{tpu_custom_call.1} parent=1 // pred_region
      _
    $region17: #{tpu_custom_call.1} parent=1 // pred_fallthru
      _
    // Predicated region
    $region18: #{tpu_custom_call.1} parent=1 // pred_check
      _
    $region19: #{tpu_custom_call.1} parent=1 // pred_check_branch
      %22 = sbr.rel (0) target = $region21
    $region20: #{tpu_custom_call.1} parent=1 // pred_region
      _
    $region21: #{tpu_custom_call.1} parent=1 // pred_fallthru
      _
    // Predicated region
    $region22: #{tpu_custom_call.1} parent=1 // pred_check
      _
    $region23: #{tpu_custom_call.1} parent=1 // pred_check_branch
      %24 = sbr.rel (0) target = $region25
    $region24: #{tpu_custom_call.1} parent=1 // pred_region
      _
    $region25: #{tpu_custom_call.1} parent=1 // pred_fallthru
      _
    // Predicated region
    $region26: #{tpu_custom_call.1} parent=1 // pred_check
      _
    $region27: #{tpu_custom_call.1} parent=1 // pred_check_branch
      %26 = sbr.rel (0) target = $region29
    $region28: #{tpu_custom_call.1} parent=1 // pred_region
      _
    $region29: #{tpu_custom_call.1} parent=1 // pred_fallthru
      _
    %v28 = vld [vmem:[%s0] sm:$0xf]
    %v29 = vld [vmem:[%s1] sm:$0xf]
    %v30 = vld [vmem:[%s1 + $0x4] sm:$0xf]
    %v31 = vld [vmem:[%s2] sm:$0x1]
    %v33 = vlaneseq
    %v34 = vshrl.u32 %v33, 7
    %v35 = vsub.s32 0, %v34
    %v36 = vrot.slane %v31, %v35
    %v40 = vunpack.c.l.b16 %v29
    %v41 = vunpack.c.l.b16 %v30
    %v42 = vpack.c.b16 %v41, %v40
    %vm44 = vcmask 130048
    %v46 = vsel %vm44, %v28, 0
    %48 = vmatprep.subr.bf16.mxu0 0
    %49 = vmatpush1.bf16.msra.mxu0 %v42
    %50 = vmatprep.subr.bf16.mxu0 0
    %51 = vmatpush1.bf16.msra.mxu0 0
    %52 = vmatprep.subr.bf16.mxu0 0
    %53 = vmatpush1.bf16.msra.mxu0 0
    %54 = vmatprep.subr.bf16.mxu0 0
    %55 = vmatpush1.bf16.msra.mxu0 0
    %56 = vmatprep.subr.bf16.mxu0 0
    %57 = vmatpush1.bf16.msra.mxu0 0
    %58 = vmatprep.subr.bf16.mxu0 0
    %59 = vmatpush1.bf16.msra.mxu0 0
    %60 = vmatprep.subr.bf16.mxu0 0
    %61 = vmatpush1.bf16.msra.mxu0 0
    %62 = vmatprep.subr.bf16.mxu0 0
    %63 = vmatpush1.bf16.msra.mxu0 0
    %64 = vmatprep.subr.bf16.mxu0 0
    %65 = vmatpush1.bf16.msra.mxu0 0
    %66 = vmatprep.subr.bf16.mxu0 0
    %67 = vmatpush1.bf16.msra.mxu0 0
    %68 = vmatprep.subr.bf16.mxu0 0
    %69 = vmatpush1.bf16.msra.mxu0 0
    %70 = vmatprep.subr.bf16.mxu0 0
    %71 = vmatpush1.bf16.msra.mxu0 0
    %72 = vmatprep.subr.bf16.mxu0 0
    %73 = vmatpush1.bf16.msra.mxu0 0
    %74 = vmatprep.subr.bf16.mxu0 0
    %75 = vmatpush1.bf16.msra.mxu0 0
    %76 = vmatprep.subr.bf16.mxu0 0
    %77 = vmatpush1.bf16.msra.mxu0 0
    %78 = vmatprep.subr.bf16.mxu0 0
    %79 = vmatpush1.bf16.msra.mxu0 0
    %80 = vmatprep.mubr.bf16.mxu0 0
    %81 = vmatmul.mubr.bf16.gmra.mrb[0].mxu0 %v46
    %v82 = vpop.f32.mrb[0].mxu0
    %v83 = vadd.f32 %v36, %v82
    %v84 = vpop.f32.mrb[0].mxu0
    %v85 = vpop.f32.mrb[0].mxu0
    %v86 = vpop.f32.mrb[0].mxu0
    %87 = vdwg.mxu0
    %v88 = vpack.c.bf16 %v83, %v83
    %v89 = vld [vmem:[%s3] sm:$0xf]
    %v90 = vld [vmem:[%s3 + $0x4] sm:$0xf]
    %v91 = vld [vmem:[%s3 + $0x8] sm:$0xf]
    %v92 = vld [vmem:[%s3 + $0xc] sm:$0xf]
    %v93 = vld [vmem:[%s3 + $0x10] sm:$0xf]
    %v94 = vld [vmem:[%s3 + $0x14] sm:$0xf]
    %v95 = vld [vmem:[%s3 + $0x18] sm:$0xf]
    %v96 = vld [vmem:[%s3 + $0x1c] sm:$0xf]
    %v97 = vld [vmem:[%s3 + $0x20] sm:$0xf]
    %v98 = vld [vmem:[%s3 + $0x24] sm:$0xf]
    %v99 = vld [vmem:[%s3 + $0x28] sm:$0xf]
    %v100 = vld [vmem:[%s3 + $0x2c] sm:$0xf]
    %v101 = vld [vmem:[%s3 + $0x30] sm:$0xf]
    %v102 = vld [vmem:[%s3 + $0x34] sm:$0xf]
    %v103 = vld [vmem:[%s3 + $0x38] sm:$0xf]
    %v104 = vld [vmem:[%s3 + $0x3c] sm:$0xf]
    %v105 = vld [vmem:[%s4] sm:$0x1]
    %v107 = vlaneseq
    %v108 = vshrl.u32 %v107, 7
    %v109 = vsub.s32 0, %v108
    %v110 = vrot.slane %v105, %v109
    %v128 = vunpack.c.l.b16 %v89
    %v129 = vunpack.c.l.b16 %v90
    %v130 = vunpack.c.l.b16 %v91
    %v131 = vunpack.c.l.b16 %v92
    %v132 = vunpack.c.l.b16 %v93
    %v133 = vunpack.c.l.b16 %v94
    %v134 = vunpack.c.l.b16 %v95
    %v135 = vunpack.c.l.b16 %v96
    %v136 = vunpack.c.l.b16 %v97
    %v137 = vunpack.c.l.b16 %v98
    %v138 = vunpack.c.l.b16 %v99
    %v139 = vunpack.c.l.b16 %v100
    %v140 = vunpack.c.l.b16 %v101
    %v141 = vunpack.c.l.b16 %v102
    %v142 = vunpack.c.l.b16 %v103
    %v143 = vunpack.c.l.b16 %v104
    %v144 = vpack.c.b16 %v129, %v128
    %v145 = vpack.c.b16 %v131, %v130
    %v146 = vpack.c.b16 %v133, %v132
    %v147 = vpack.c.b16 %v135, %v134
    %v148 = vpack.c.b16 %v137, %v136
    %v149 = vpack.c.b16 %v139, %v138
    %v150 = vpack.c.b16 %v141, %v140
    %v151 = vpack.c.b16 %v143, %v142
    %160 = vmatprep.subr.bf16.mxu0 0
    %161 = vmatpush1.bf16.msra.mxu0 %v144
    %162 = vmatprep.subr.bf16.mxu0 0
    %163 = vmatpush1.bf16.msra.mxu0 %v145
    %164 = vmatprep.subr.bf16.mxu0 0
    %165 = vmatpush1.bf16.msra.mxu0 %v146
    %166 = vmatprep.subr.bf16.mxu0 0
    %167 = vmatpush1.bf16.msra.mxu0 %v147
    %168 = vmatprep.subr.bf16.mxu0 0
    %169 = vmatpush1.bf16.msra.mxu0 %v148
    %170 = vmatprep.subr.bf16.mxu0 0
    %171 = vmatpush1.bf16.msra.mxu0 %v149
    %172 = vmatprep.subr.bf16.mxu0 0
    %173 = vmatpush1.bf16.msra.mxu0 %v150
    %174 = vmatprep.subr.bf16.mxu0 0
    %175 = vmatpush1.bf16.msra.mxu0 %v151
    %176 = vmatprep.subr.bf16.mxu0 0
    %177 = vmatpush1.bf16.msra.mxu0 0
    %178 = vmatprep.subr.bf16.mxu0 0
    %179 = vmatpush1.bf16.msra.mxu0 0
    %180 = vmatprep.subr.bf16.mxu0 0
    %181 = vmatpush1.bf16.msra.mxu0 0
    %182 = vmatprep.subr.bf16.mxu0 0
    %183 = vmatpush1.bf16.msra.mxu0 0
    %184 = vmatprep.subr.bf16.mxu0 0
    %185 = vmatpush1.bf16.msra.mxu0 0
    %186 = vmatprep.subr.bf16.mxu0 0
    %187 = vmatpush1.bf16.msra.mxu0 0
    %188 = vmatprep.subr.bf16.mxu0 0
    %189 = vmatpush1.bf16.msra.mxu0 0
    %190 = vmatprep.subr.bf16.mxu0 0
    %191 = vmatpush1.bf16.msra.mxu0 0
    %192 = vmatprep.mubr.bf16.mxu0 0
    %193 = vmatmul.mubr.bf16.gmra.mrb[0].mxu0 %v88
    %v194 = vpop.f32.mrb[0].mxu0
    %v195 = vadd.f32 %v110, %v194
    %v196 = vpop.f32.mrb[0].mxu0
    %v197 = vpop.f32.mrb[0].mxu0
    %v198 = vpop.f32.mrb[0].mxu0
    %199 = vdwg.mxu0
    %v200 = vpack.c.bf16 %v195, %v195
    %v201 = vld [vmem:[%s5] sm:$0x1]
    %v202 = vld [vmem:[%s6] sm:$0x3]
    %204 = vset.pattern.permute.xlu0 0
    %205 = vperm.xlu0 %204, %v202
    %v206 = vpop.permute.xlu0 %205
    %vm208 = vcmask 261120
    %v210 = vsel %vm208, %v201, 0
    %v213 = vsel %vm208, %v200, 0
    %215 = vmatprep.subr.bf16.mxu0 0
    %216 = vmatpush1.bf16.xpose.msra.mxu0 %v213
    %217 = vmatprep.subr.bf16.mxu0 0
    %218 = vmatpush1.bf16.xpose.msra.mxu0 0
    %219 = vmatprep.subr.bf16.mxu0 0
    %220 = vmatpush1.bf16.xpose.msra.mxu0 0
    %221 = vmatprep.subr.bf16.mxu0 0
    %222 = vmatpush1.bf16.xpose.msra.mxu0 0
    %223 = vmatprep.subr.bf16.mxu0 0
    %224 = vmatpush1.bf16.xpose.msra.mxu0 0
    %225 = vmatprep.subr.bf16.mxu0 0
    %226 = vmatpush1.bf16.xpose.msra.mxu0 0
    %227 = vmatprep.subr.bf16.mxu0 0
    %228 = vmatpush1.bf16.xpose.msra.mxu0 0
    %229 = vmatprep.subr.bf16.mxu0 0
    %230 = vmatpush1.bf16.xpose.msra.mxu0 0
    %231 = vmatprep.subr.bf16.mxu0 0
    %232 = vmatpush1.bf16.xpose.msra.mxu0 0
    %233 = vmatprep.subr.bf16.mxu0 0
    %234 = vmatpush1.bf16.xpose.msra.mxu0 0
    %235 = vmatprep.subr.bf16.mxu0 0
    %236 = vmatpush1.bf16.xpose.msra.mxu0 0
    %237 = vmatprep.subr.bf16.mxu0 0
    %238 = vmatpush1.bf16.xpose.msra.mxu0 0
    %239 = vmatprep.subr.bf16.mxu0 0
    %240 = vmatpush1.bf16.xpose.msra.mxu0 0
    %241 = vmatprep.subr.bf16.mxu0 0
    %242 = vmatpush1.bf16.xpose.msra.mxu0 0
    %243 = vmatprep.subr.bf16.mxu0 0
    %244 = vmatpush1.bf16.xpose.msra.mxu0 0
    %245 = vmatprep.subr.bf16.mxu0 0
    %246 = vmatpush1.bf16.xpose.msra.mxu0 0
    %247 = vmatprep.mubr.bf16.mxu0 0
    %248 = vmatmul.mubr.bf16.gmra.mrb[0].mxu0 %v210
    %v249 = vpop.f32.mrb[0].mxu0
    %v250 = vadd.f32 %v206, %v249
    %v251 = vpop.f32.mrb[0].mxu0
    %v252 = vpop.f32.mrb[0].mxu0
    %v253 = vpop.f32.mrb[0].mxu0
    %254 = vdwg.mxu0
    %v255 = vsub.f32 0.0, %v250
    %v256 = vmul.f32 %v255, 1.442695
    %v257 = vpow.pop %v256
    %v258 = vadd.f32 %v257, 1.0
    %v259 = vrcp.pop %v258
    %vm260 = vcmask 58368
    %261 = vst.msk [vmem:[#allocation2] sm:$0x3] %vm260, %v259
    // Predicated region
    $region30: #{tpu_custom_call.1} parent=1 // pred_check
      _
    $region31: #{tpu_custom_call.1} parent=1 // pred_check_branch
      %263 = sbr.rel (0) target = $region33
    $region32: #{tpu_custom_call.1} parent=1 // pred_region
      %s265 = ssub.s32 32, 32
      %266 = vsyncadd [#allocation3], %s265
      %s268 = sshll.u32 [#allocation2], 4
      %s269 = int_to_ptr.vmem [resolvable:$true] %s268
      %271 = dma.vmem_to_hbm [thread:$0]  %s269, 32, %s7, [#allocation3]
    $region33: #{tpu_custom_call.1} parent=1 // pred_fallthru
      _
    // Predicated region
    $region34: #{tpu_custom_call.1} parent=1 // pred_check
      _
    $region35: #{tpu_custom_call.1} parent=1 // pred_check_branch
      %273 = sbr.rel (0) target = $region37
    $region36: #{tpu_custom_call.1} parent=1 // pred_region
      %274 = dma.done [#allocation3], 32
    $region37: #{tpu_custom_call.1} parent=1 // pred_fallthru
      _
    %275 = vsyncpa [#allocation3], 1

</llo_original>
